<compile_context>
chip_gen: v5e
topology: v5e:2x2
jax: 0.10.0
libtpu: 0.0.40
codegen_flags: <defaults>
</compile_context>

<pallas_src>
import functools

import jax
import jax.numpy as jnp
from jax.experimental import pallas as pl
from jax.experimental.pallas import tpu as pltpu

# torchvision VGG16 'D' config has 5 pooling layers -> 5 AvgPool2d(2, 2).
NUM_POOLS = 5


def _round_up(x, m):
    return ((x + m - 1) // m) * m


def _sublane(itemsize):
    return {4: 8, 2: 16, 1: 32}.get(int(itemsize), 8)


def _composed_w_pool_matrix(w, s):
    """(W, W/s) matrix: column j has 1/(s*s) on rows [j*s, (j+1)*s), else 0."""
    wo = w // s
    rows = jax.lax.broadcasted_iota(jnp.int32, (w, wo), 0)
    cols = jax.lax.broadcasted_iota(jnp.int32, (w, wo), 1)
    scale = jnp.float32(1.0 / (s * s))          # exact power of two
    return jnp.where((rows // s) == cols, scale, jnp.float32(0.0))


def _pool_kernel_general(a_w_ref, x_ref, o_ref, *, s, ho):
    c_blk, _, w = x_ref.shape
    x = x_ref[...].astype(jnp.float32)                       # (C_BLK, H, W)
    # H pooling: sum every group of s consecutive rows.  The reshape only
    # re-groups the leading/sublane dims (minor dim W unchanged).
    hr = jnp.sum(x.reshape(c_blk * ho, s, w), axis=1)        # (C_BLK*HO, W)
    # W pooling + 1/(s*s) scaling: single MXU right-matmul with the resident
    # composed matrix.
    pooled = jnp.dot(hr, a_w_ref[...],
                     preferred_element_type=jnp.float32)     # (C_BLK*HO, WO)
    o_ref[0] = pooled.astype(o_ref.dtype)


def _pool_kernel_wo1(x_ref, o_ref, *, s, ho):
    # Special case WO == 1 (e.g. 32x32 -> 1x1): lane-sum instead of matmul.
    c_blk, _, w = x_ref.shape
    x = x_ref[...].astype(jnp.float32)                       # (C_BLK, H, W)
    hr = jnp.sum(x.reshape(c_blk * ho, s, w), axis=1)        # (C_BLK*HO, W)
    pooled = jnp.sum(hr, axis=-1, keepdims=True) * jnp.float32(1.0 / (s * s))
    o_ref[0] = pooled.astype(o_ref.dtype)                    # (C_BLK*HO, 1)


def _has_two_tensorcores():
    """True on chips with 2 TensorCores per chip (v7x); tiling hint only."""
    try:
        info = pltpu.get_tpu_info()
        for attr in ("num_tensorcores", "tensorcores_per_chip", "num_cores"):
            v = getattr(info, attr, None)
            if v is not None:
                return int(v) >= 2
    except Exception:
        pass
    try:
        return "v7" in jax.devices()[0].device_kind.lower()
    except Exception:
        return False


def _choose_tiling(p, h, w, in_itemsize, *, two_tc):
    """Planes per grid step, sized against a layout-padded VMEM budget that is
    valid on v5e/v6e (128 MiB) and v7x (64 MiB)."""
    plane_bytes = (_round_up(h, _sublane(in_itemsize))
                   * _round_up(w, 128) * in_itemsize)        # padded HBM->VMEM tile
    budget = 8 << 20                                         # per input pipeline buffer
    c_blk = int(max(1, min(budget // plane_bytes, p, 1024)))
    if two_tc and p >= 2:
        # v7x only: make sure both TensorCores get work, and bias the grid
        # length towards an even number of (bandwidth-bound) steps.
        nb0 = pl.cdiv(p, c_blk)
        if nb0 < 2 or nb0 % 2:
            target = max(2, nb0 + (nb0 % 2))
            best = max(1, pl.cdiv(p, target))                # fallback: >= 2 steps
            for nb_try in range(target, target + 9, 2):
                cb = max(1, pl.cdiv(p, nb_try))
                if pl.cdiv(p, cb) % 2 == 0:
                    best = cb
                    break
            c_blk = best
    nb = pl.cdiv(p, c_blk)
    return c_blk, nb, plane_bytes


def mask_layers_forward(x, num_pools=NUM_POOLS, *, _c_blk_override=None):
    """x: (N, C, H, W). Returns AvgPool2d(2,2) applied num_pools times."""
    n, c, h, w = x.shape
    s = 2 ** num_pools
    # TODO(synk): PyTorch AvgPool2d(2,2) floor-truncates odd spatial dims at
    # each stage; we require exact divisibility instead of emulating that.
    assert h % s == 0 and w % s == 0, "H, W must be divisible by 2**num_pools"
    ho, wo = h // s, w // s
    p = n * c
    in_itemsize = jnp.dtype(x.dtype).itemsize

    two_tc = _has_two_tensorcores()
    c_blk, nb, plane_bytes = _choose_tiling(p, h, w, in_itemsize, two_tc=two_tc)
    if _c_blk_override is not None:                          # test hook
        c_blk = int(_c_blk_override)
        nb = pl.cdiv(p, c_blk)

    x2 = x.reshape(p, h, w)                                  # fold N, C together

    # Layout-padded VMEM accounting: 2x input buffer + 2x output buffer + A_W.
    out_itemsize = in_itemsize
    out_block_bytes = (_round_up(c_blk * ho, _sublane(out_itemsize))
                       * _round_up(wo, 128) * out_itemsize)
    aw_bytes = 0 if wo == 1 else _round_up(w, 8) * _round_up(wo, 128) * 4
    vmem_bytes = 2 * c_blk * plane_bytes + 2 * out_block_bytes + aw_bytes
    vmem_limit = int(min(max(vmem_bytes + (4 << 20), 16 << 20), 64 << 20))

    cost = pl.CostEstimate(                                   # heavily HBM-read-bound
        flops=int(p * h * w + 2 * p * ho * w * max(wo, 1)),
        transcendentals=0,
        bytes_accessed=int(p * h * w * in_itemsize
                           + p * ho * wo * out_itemsize + aw_bytes),
    )

    common = dict(
        out_shape=jax.ShapeDtypeStruct((nb, c_blk * ho, wo), x.dtype),
        grid=(nb,),
        out_specs=pl.BlockSpec((1, c_blk * ho, wo), lambda i: (i, 0, 0)),
        compiler_params=pltpu.CompilerParams(
            dimension_semantics=("parallel",),
            vmem_limit_bytes=vmem_limit),
        cost_estimate=cost,
    )

    if wo == 1:
        out = pl.pallas_call(
            functools.partial(_pool_kernel_wo1, s=s, ho=ho),
            in_specs=[pl.BlockSpec((c_blk, h, w), lambda i: (i, 0, 0))],
            **common,
        )(x2)
    else:
        a_w = _composed_w_pool_matrix(w, s)                  # (W, WO) f32, exact
        out = pl.pallas_call(
            functools.partial(_pool_kernel_general, s=s, ho=ho),
            in_specs=[pl.BlockSpec((w, wo), lambda i: (0, 0)),       # resident A_W
                      pl.BlockSpec((c_blk, h, w), lambda i: (i, 0, 0))],
            **common,
        )(a_w, x2)

    # (NB, C_BLK*HO, WO) -> drop ragged-padding rows -> (N, C, HO, WO).
    y = out.reshape(nb * c_blk, ho, wo)[:p].reshape(n, c, ho, wo)
    return y


def _reference(x, num_pools=NUM_POOLS):
    # Pure-JAX reference: iterative 2x2 average pooling (f32 accumulation),
    # matching the PyTorch composition of AvgPool2d(2, 2) layers.
    xf = x.astype(jnp.float32)
    for _ in range(num_pools):
        n, c, h, w = xf.shape
        xf = xf.reshape(n, c, h // 2, 2, w // 2, 2).mean(axis=(3, 5))
    return xf.astype(x.dtype)


if __name__ == "__main__":
    key = jax.random.PRNGKey(0)
    k1, k2, k3 = jax.random.split(key, 3)

    # 1) VGG16-style: 5 pools, 32x32 -> 1x1 (WO == 1 lane-sum path).
    x1 = jax.random.normal(k1, (2, 4, 32, 32), dtype=jnp.float32)
    y1 = mask_layers_forward(x1)
    jax.block_until_ready(y1)
    assert y1.shape == (2, 4, 1, 1), y1.shape
    assert jnp.allclose(y1, _reference(x1), atol=1e-5, rtol=1e-5), "mismatch (32x32)"

    # 2) HO, WO > 1: exercises the resident-A_W MXU matmul path.
    x2 = jax.random.normal(k2, (2, 4, 64, 64), dtype=jnp.float32)
    y2 = mask_layers_forward(x2)
    jax.block_until_ready(y2)
    assert y2.shape == (2, 4, 2, 2), y2.shape
    assert jnp.allclose(y2, _reference(x2), atol=1e-5, rtol=1e-5), "mismatch (64x64)"

    # 3) bf16 feature maps (caller bandwidth contract) with awkward N*C = 15 and
    #    a forced small block -> ragged last grid step (no divisor constraint).
    x3 = jax.random.normal(k3, (3, 5, 32, 32), dtype=jnp.float32).astype(jnp.bfloat16)
    y3 = mask_layers_forward(x3, _c_blk_override=4)          # nb = 4, last block ragged
    jax.block_until_ready(y3)
    assert y3.shape == (3, 5, 1, 1), y3.shape
    assert jnp.allclose(y3.astype(jnp.float32),
                        _reference(x3).astype(jnp.float32),
                        atol=2e-2, rtol=2e-2), "mismatch (bf16, ragged)"

    print("KERNEL_OK")
</pallas_src>

<mosaic_0001>
module attributes {stable_mosaic.version = 11 : i64} {
  func.func @_pool_kernel_wo1(%arg0: i32, %arg1: memref<8x32x32xf32, #tpu.memory_space<vmem>>, %arg2: memref<1x8x1xf32, #tpu.memory_space<vmem>>) attributes {dimension_semantics = [#tpu.dimension_semantics<parallel>], iteration_bounds = array<i64: 1>, scalar_prefetch = 0 : i64, scratch_operands = 0 : i64, tpu.core_type = #tpu.core_type<tc>, window_params = [{transform_indices = @transform_0, window_bounds = array<i64: 8, 32, 32>}, {transform_indices = @transform_1, window_bounds = array<i64: 1, 8, 1>}]} {
    %c0 = arith.constant 0 : index
    %c0_0 = arith.constant 0 : index
    %c0_1 = arith.constant 0 : index
    %0 = vector.load %arg1[%c0, %c0_0, %c0_1] : memref<8x32x32xf32, #tpu.memory_space<vmem>>, vector<8x32x32xf32>
    %cst = arith.constant dense<0.000000e+00> : vector<8x32xf32>
    %1 = vector.multi_reduction <add>, %0, %cst [1] : vector<8x32x32xf32> to vector<8x32xf32>
    %cst_2 = arith.constant dense<0.000000e+00> : vector<8xf32>
    %2 = vector.multi_reduction <add>, %1, %cst_2 [1] : vector<8x32xf32> to vector<8xf32>
    %3 = vector.shape_cast %2 : vector<8xf32> to vector<8x1xf32>
    %cst_3 = arith.constant 9.765625E-4 : f32
    %4 = vector.broadcast %cst_3 : f32 to vector<8x1xf32>
    %5 = arith.mulf %3, %4 : vector<8x1xf32>
    %c0_4 = arith.constant 0 : index
    %c0_5 = arith.constant 0 : index
    %c0_6 = arith.constant 0 : index
    %6 = vector.load %arg2[%c0_4, %c0_5, %c0_6] : memref<1x8x1xf32, #tpu.memory_space<vmem>>, vector<1x8x1xf32>
    %7 = vector.shape_cast %6 : vector<1x8x1xf32> to vector<8x1xf32>
    %8 = vector.shape_cast %5 : vector<8x1xf32> to vector<1x8x1xf32>
    tpu.vector_store %arg2[%c0_4, %c0_5, %c0_6], %8 {strides = array<i32>} : memref<1x8x1xf32, #tpu.memory_space<vmem>>, vector<1x8x1xf32>,
    return
  }
  func.func @transform_0(%arg0: i32) -> (i32, i32, i32) {
    %c0_i32 = arith.constant 0 : i32
    %c0_i32_0 = arith.constant 0 : i32
    %c0_i32_1 = arith.constant 0 : i32
    return %arg0, %c0_i32, %c0_i32_0 : i32, i32, i32
  }
  func.func @transform_1(%arg0: i32) -> (i32, i32, i32) {
    %c0_i32 = arith.constant 0 : i32
    %c0_i32_0 = arith.constant 0 : i32
    %c0_i32_1 = arith.constant 0 : i32
    return %arg0, %c0_i32, %c0_i32_0 : i32, i32, i32
  }
}

</mosaic_0001>

<llo_original>
// kernel: tpu_custom_call.1
$region0: #{tpu_custom_call.1}
  #allocation0 [shape = 'u32[]', space=smem, size = 0x4, offset = 0x4, fixed_abs, tag = 'smem constant byte address 0x4 - core index']
  #allocation1 [shape = 'u32[72,128]{1,0:T(1,128)}', space=vmem, size = 0x9000, scoped, tag = 'internal scratch']
  %s0 = inlined_call_operand.hbm [shape: f32[8,32,32], index: 0, kind: input, shape index: {}]
  %s1 = inlined_call_operand.vmem [shape: f32[1,8,1], index: 1, kind: output, shape index: {}]
  %s2 = sld [smem:[#allocation0]]
  $region18: #{tpu_custom_call.1} parent=0
    _
  %s4 = ssub.s32 1, %s2
  %s5 = scalar_select 0, %s4, %s2
  $region1: #{tpu_custom_call.1} parent=0
    #allocation2 [shape = 'u8[131072]{0}', space=vmem, size = 0x20000, scoped, tag = 'input window, operand 0, single buffered']
    #allocation3 [shape = 's32[1]{0}', space=sflag, size = 0x4, scoped, tag = 'scoped memory for tpu_custom_call.1']
    %6 = vsyncpa [#allocation3], 0
    // Predicated region
    $region2: #{tpu_custom_call.1} parent=1 // pred_check
      _
    $region3: #{tpu_custom_call.1} parent=1 // pred_check_branch
      %8 = sbr.rel (0) target = $region5
    $region4: #{tpu_custom_call.1} parent=1 // pred_region
      %10 = vsyncadd [#allocation3], 0
      %s11 = sshll.u32 %s0, 4
      %s12 = int_to_ptr.hbm [resolvable:$true] %s11
      %s13 = sshll.u32 [#allocation2], 4
      %s14 = int_to_ptr.vmem [resolvable:$true] %s13
      %19 = dma.hbm_to_vmem [thread:$0]  %s12, 4096, %s14, [#allocation3], 128, 128, 8
    $region5: #{tpu_custom_call.1} parent=1 // pred_fallthru
      _
    // Predicated region
    $region6: #{tpu_custom_call.1} parent=1 // pred_check
      _
    $region7: #{tpu_custom_call.1} parent=1 // pred_check_branch
      %21 = sbr.rel (0) target = $region9
    $region8: #{tpu_custom_call.1} parent=1 // pred_region
      %23 = dma.done [#allocation3], 4096
    $region9: #{tpu_custom_call.1} parent=1 // pred_fallthru
      _
    %v24 = vld [vmem:[#allocation2] sm:$0xff]
    %v25 = vld [vmem:[#allocation2 + $0x8] sm:$0xff]
    %v26 = vld [vmem:[#allocation2 + $0x10] sm:$0xff]
    %v27 = vld [vmem:[#allocation2 + $0x18] sm:$0xff]
    %v28 = vld [vmem:[#allocation2 + $0x20] sm:$0xff]
    %v29 = vld [vmem:[#allocation2 + $0x28] sm:$0xff]
    %v30 = vld [vmem:[#allocation2 + $0x30] sm:$0xff]
    %v31 = vld [vmem:[#allocation2 + $0x38] sm:$0xff]
    %v32 = vld [vmem:[#allocation2 + $0x40] sm:$0xff]
    %v33 = vld [vmem:[#allocation2 + $0x48] sm:$0xff]
    %v34 = vld [vmem:[#allocation2 + $0x50] sm:$0xff]
    %v35 = vld [vmem:[#allocation2 + $0x58] sm:$0xff]
    %v36 = vld [vmem:[#allocation2 + $0x60] sm:$0xff]
    %v37 = vld [vmem:[#allocation2 + $0x68] sm:$0xff]
    %v38 = vld [vmem:[#allocation2 + $0x70] sm:$0xff]
    %v39 = vld [vmem:[#allocation2 + $0x78] sm:$0xff]
    %v40 = vld [vmem:[#allocation2 + $0x80] sm:$0xff]
    %v41 = vld [vmem:[#allocation2 + $0x88] sm:$0xff]
    %v42 = vld [vmem:[#allocation2 + $0x90] sm:$0xff]
    %v43 = vld [vmem:[#allocation2 + $0x98] sm:$0xff]
    %v44 = vld [vmem:[#allocation2 + $0xa0] sm:$0xff]
    %v45 = vld [vmem:[#allocation2 + $0xa8] sm:$0xff]
    %v46 = vld [vmem:[#allocation2 + $0xb0] sm:$0xff]
    %v47 = vld [vmem:[#allocation2 + $0xb8] sm:$0xff]
    %v48 = vld [vmem:[#allocation2 + $0xc0] sm:$0xff]
    %v49 = vld [vmem:[#allocation2 + $0xc8] sm:$0xff]
    %v50 = vld [vmem:[#allocation2 + $0xd0] sm:$0xff]
    %v51 = vld [vmem:[#allocation2 + $0xd8] sm:$0xff]
    %v52 = vld [vmem:[#allocation2 + $0xe0] sm:$0xff]
    %v53 = vld [vmem:[#allocation2 + $0xe8] sm:$0xff]
    %v54 = vld [vmem:[#allocation2 + $0xf0] sm:$0xff]
    %v55 = vld [vmem:[#allocation2 + $0xf8] sm:$0xff]
    %vm56 = vcmask 261120
    %v57 = vsel %vm56, %v24, 0.0
    %v58 = vsel %vm56, %v25, 0.0
    %v59 = vadd.f32 %v57, %v58
    %v60 = vsel %vm56, %v26, 0.0
    %v61 = vadd.f32 %v59, %v60
    %v62 = vsel %vm56, %v27, 0.0
    %v63 = vadd.f32 %v61, %v62
    %v64 = vrot.slane %v63, 4
    %v65 = vadd.f32 %v63, %v64
    %v66 = vrot.slane %v65, 2
    %v67 = vadd.f32 %v65, %v66
    %v68 = vrot.slane %v67, 1
    %v69 = vadd.f32 %v67, %v68
    %v70 = vsel %vm56, %v28, 0.0
    %v71 = vsel %vm56, %v29, 0.0
    %v72 = vadd.f32 %v70, %v71
    %v73 = vsel %vm56, %v30, 0.0
    %v74 = vadd.f32 %v72, %v73
    %v75 = vsel %vm56, %v31, 0.0
    %v76 = vadd.f32 %v74, %v75
    %v77 = vrot.slane %v76, 4
    %v78 = vadd.f32 %v76, %v77
    %v79 = vrot.slane %v78, 2
    %v80 = vadd.f32 %v78, %v79
    %v81 = vrot.slane %v80, 1
    %v82 = vadd.f32 %v80, %v81
    %v83 = vsel %vm56, %v32, 0.0
    %v84 = vsel %vm56, %v33, 0.0
    %v85 = vadd.f32 %v83, %v84
    %v86 = vsel %vm56, %v34, 0.0
    %v87 = vadd.f32 %v85, %v86
    %v88 = vsel %vm56, %v35, 0.0
    %v89 = vadd.f32 %v87, %v88
    %v90 = vrot.slane %v89, 4
    %v91 = vadd.f32 %v89, %v90
    %v92 = vrot.slane %v91, 2
    %v93 = vadd.f32 %v91, %v92
    %v94 = vrot.slane %v93, 1
    %v95 = vadd.f32 %v93, %v94
    %v96 = vsel %vm56, %v36, 0.0
    %v97 = vsel %vm56, %v37, 0.0
    %v98 = vadd.f32 %v96, %v97
    %v99 = vsel %vm56, %v38, 0.0
    %v100 = vadd.f32 %v98, %v99
    %v101 = vsel %vm56, %v39, 0.0
    %v102 = vadd.f32 %v100, %v101
    %v103 = vrot.slane %v102, 4
    %v104 = vadd.f32 %v102, %v103
    %v105 = vrot.slane %v104, 2
    %v106 = vadd.f32 %v104, %v105
    %v107 = vrot.slane %v106, 1
    %v108 = vadd.f32 %v106, %v107
    %v109 = vsel %vm56, %v40, 0.0
    %v110 = vsel %vm56, %v41, 0.0
    %v111 = vadd.f32 %v109, %v110
    %v112 = vsel %vm56, %v42, 0.0
    %v113 = vadd.f32 %v111, %v112
    %v114 = vsel %vm56, %v43, 0.0
    %v115 = vadd.f32 %v113, %v114
    %v116 = vrot.slane %v115, 4
    %v117 = vadd.f32 %v115, %v116
    %v118 = vrot.slane %v117, 2
    %v119 = vadd.f32 %v117, %v118
    %v120 = vrot.slane %v119, 1
    %v121 = vadd.f32 %v119, %v120
    %v122 = vsel %vm56, %v44, 0.0
    %v123 = vsel %vm56, %v45, 0.0
    %v124 = vadd.f32 %v122, %v123
    %v125 = vsel %vm56, %v46, 0.0
    %v126 = vadd.f32 %v124, %v125
    %v127 = vsel %vm56, %v47, 0.0
    %v128 = vadd.f32 %v126, %v127
    %v129 = vrot.slane %v128, 4
    %v130 = vadd.f32 %v128, %v129
    %v131 = vrot.slane %v130, 2
    %v132 = vadd.f32 %v130, %v131
    %v133 = vrot.slane %v132, 1
    %v134 = vadd.f32 %v132, %v133
    %v135 = vsel %vm56, %v48, 0.0
    %v136 = vsel %vm56, %v49, 0.0
    %v137 = vadd.f32 %v135, %v136
    %v138 = vsel %vm56, %v50, 0.0
    %v139 = vadd.f32 %v137, %v138
    %v140 = vsel %vm56, %v51, 0.0
    %v141 = vadd.f32 %v139, %v140
    %v142 = vrot.slane %v141, 4
    %v143 = vadd.f32 %v141, %v142
    %v144 = vrot.slane %v143, 2
    %v145 = vadd.f32 %v143, %v144
    %v146 = vrot.slane %v145, 1
    %v147 = vadd.f32 %v145, %v146
    %v148 = vsel %vm56, %v52, 0.0
    %v149 = vsel %vm56, %v53, 0.0
    %v150 = vadd.f32 %v148, %v149
    %v151 = vsel %vm56, %v54, 0.0
    %v152 = vadd.f32 %v150, %v151
    %v153 = vsel %vm56, %v55, 0.0
    %v154 = vadd.f32 %v152, %v153
    %v155 = vrot.slane %v154, 4
    %v156 = vadd.f32 %v154, %v155
    %v157 = vrot.slane %v156, 2
    %v158 = vadd.f32 %v156, %v157
    %v159 = vrot.slane %v158, 1
    %v160 = vadd.f32 %v158, %v159
    %vm169 = vcmask 1041409
    %v170 = vsel %vm169, %v82, %v69
    %vm171 = vcmask 1042434
    %v172 = vsel %vm171, %v95, %v170
    %vm173 = vcmask 1043459
    %v174 = vsel %vm173, %v108, %v172
    %vm175 = vcmask 1044484
    %v176 = vsel %vm175, %v121, %v174
    %vm177 = vcmask 1045509
    %v178 = vsel %vm177, %v134, %v176
    %vm179 = vcmask 1046534
    %v180 = vsel %vm179, %v147, %v178
    %vm181 = vcmask 1047559
    %v182 = vsel %vm181, %v160, %v180
    %v184 = vsel %vm56, %v182, 0.0
    %185 = vadd.xlane.f32.xlu0 %v184
    %v186 = vpop.xlane.xlu0 %185
    %v187 = vmul.f32 %v186, 0.0009765625
    %vm188 = vcmask 7168
    %189 = vst.msk [vmem:[%s1] sm:$0xff] %vm188, %v187
    // Predicated region
    $region10: #{tpu_custom_call.1} parent=1 // pred_check
      _
    $region11: #{tpu_custom_call.1} parent=1 // pred_check_branch
      %191 = sbr.rel (0) target = $region13
    $region12: #{tpu_custom_call.1} parent=1 // pred_region
      _
    $region13: #{tpu_custom_call.1} parent=1 // pred_fallthru
      _
    // Predicated region
    $region14: #{tpu_custom_call.1} parent=1 // pred_check
      _
    $region15: #{tpu_custom_call.1} parent=1 // pred_check_branch
      %193 = sbr.rel (0) target = $region17
    $region16: #{tpu_custom_call.1} parent=1 // pred_region
      _
    $region17: #{tpu_custom_call.1} parent=1 // pred_fallthru
      _
    %194 = vsyncpa [#allocation3], 1

</llo_original>
